<compile_context>
chip_gen: v7x
topology: tpu7x:2x2x1
jax: 0.10.0
libtpu: 0.0.40
codegen_flags: <defaults>
</compile_context>

<pallas_src>
import math

import jax
import jax.numpy as jnp
from jax.experimental import pallas as pl
from jax.experimental.pallas import tpu as pltpu


# ----------------------------------------------------------------------------
# Pallas kernel: full dueling-categorical forward pass for one batch block.
# ----------------------------------------------------------------------------
def dueling_kernel(
    x_ref,                    # (TB, S)
    w1_ref, b1_ref,           # (S, H), (1, H)
    w2_ref, b2_ref,           # (H, H), (1, H)
    wh_ref, bh_ref,           # (H, 2H), (1, 2H)      fused adv/val hidden heads
    wo_ref, bo_ref,           # (2H, A*N), (1, A*N)   fused (centered adv + tiled val) out
    seg_ref,                  # (A*N, A*N)            block-diag ones: per-action sum
    dist_ref,                 # out: (TB, A*N)        lane-dense
):
    f32 = jnp.float32
    relu = lambda t: jnp.maximum(t, 0.0)

    x = x_ref[...]

    # hidden trunk: NoisyLinear -> ReLU -> NoisyLinear -> ReLU
    h = relu(jnp.dot(x, w1_ref[...], preferred_element_type=f32) + b1_ref[...])
    h = relu(jnp.dot(h, w2_ref[...], preferred_element_type=f32) + b2_ref[...])

    # fused dueling head-hidden layer: one (TB, 2H) matmul = [a_hid | v_hid]
    heads = relu(jnp.dot(h, wh_ref[...], preferred_element_type=f32) + bh_ref[...])

    # fused output head: q[:, a*N + n] = value[:, n] + (adv - mean_a adv)[:, a, n]
    q = jnp.dot(heads, wo_ref[...], preferred_element_type=f32) + bo_ref[...]

    # Per-action softmax over the N atoms with NO reshape / slice / stack:
    #   - softmax is shift-invariant, so subtracting the row-wide max (a
    #     constant within every action's N-atom segment) equals the
    #     per-action-max formulation exactly,
    #   - per-action denominators come from one tiny block-diagonal ones
    #     matmul, broadcast back over each segment's lanes.
    m = jnp.max(q, axis=-1, keepdims=True)                        # (TB, 1)
    e = jnp.exp(q - m)                                            # EUP
    s = jnp.dot(e, seg_ref[...], preferred_element_type=f32)      # (TB, A*N)
    p = e * pl.reciprocal(s, approx=False)   # approx=True exceeds 1e-5 tolerance
    dist_ref[...] = jnp.maximum(p, 0.001)    # clamp(min=0.001), one dense store


# ----------------------------------------------------------------------------
# One-time host-side parameter preparation (hoisted out of the call path).
# ----------------------------------------------------------------------------
def prepare_params(layers, action_dim, n_atoms):
    """layers: dict of effective (W(out,in), b(out,)) per NoisyLinear layer."""
    A, N = action_dim, n_atoms

    def t(wb):
        w, b = wb
        return w.T.astype(jnp.float32), b.reshape(1, -1).astype(jnp.float32)

    w1, b1 = t(layers["l1"])
    w2, b2 = t(layers["l2"])
    wah, bah = t(layers["adv_h"])
    wvh, bvh = t(layers["val_h"])
    wvl, bvl = t(layers["val_o"])            # (H, N), (1, N)

    # Fuse the two dueling head-hidden layers into a single (H, 2H) matmul.
    w_heads = jnp.concatenate([wah, wvh], axis=1)
    b_heads = jnp.concatenate([bah, bvh], axis=1)

    # Advantage output layer, centered over actions on the host (folds the
    # `- advantage.mean(dim=1)` into the weights by linearity).
    wal_raw, bal_raw = layers["adv_o"]       # (A*N, H), (A*N,)
    H = wal_raw.shape[1]
    w_adv = wal_raw.reshape(A, N, H).astype(jnp.float32)
    w_adv = w_adv - jnp.mean(w_adv, axis=0, keepdims=True)
    w_adv = w_adv.transpose(2, 0, 1).reshape(H, A * N)
    b_adv = bal_raw.reshape(A, N).astype(jnp.float32)
    b_adv = b_adv - jnp.mean(b_adv, axis=0, keepdims=True)
    b_adv = b_adv.reshape(1, A * N)

    # Fold the value head into the same output matmul: tile W_val across the
    # A action segments so q = [a_hid | v_hid] @ [W_adv_c ; tile(W_val)] + b_out.
    w_out = jnp.concatenate([w_adv, jnp.tile(wvl, (1, A))], axis=0)   # (2H, A*N)
    b_out = b_adv + jnp.tile(bvl, (1, A))                             # (1, A*N)

    # Block-diagonal ones matrix: (e @ seg)[b, a*N+n] = sum_m e[b, a*N+m],
    # i.e. the per-action softmax denominator broadcast over its N lanes.
    seg_mask = jnp.kron(jnp.eye(A, dtype=jnp.float32),
                        jnp.ones((N, N), dtype=jnp.float32))          # (A*N, A*N)

    # NOTE: on v6e/v7x, casting x and the matmul weights to bfloat16 (keeping
    # preferred_element_type=f32) halves HBM/VMEM traffic and doubles MXU
    # issue rate; kept f32 here so the 1e-5 reference check holds (and v5e's
    # VPU/EUP have no bf16). Remaining (1, ·) bias operands are tiny and kept
    # separate; folding them would need an in-kernel ones-column concat
    # (XLU relayout) for no net win.
    return {
        "w1": w1, "b1": b1,
        "w2": w2, "b2": b2,
        "w_heads": w_heads, "b_heads": b_heads,
        "w_out": w_out, "b_out": b_out,
        "seg_mask": seg_mask,
    }


# ----------------------------------------------------------------------------
# Host wrapper (batch-tiled "parallel" grid, weights resident).
# ----------------------------------------------------------------------------
def categorical_dueling_forward(x, params, *, action_dim, n_atoms, block_b=None):
    B, S = x.shape
    A, N = action_dim, n_atoms
    AN = A * N

    # Batch tile selection:
    #   * B <= 8: single full block (can't split below the 8-sublane rule).
    #   * otherwise: at least 2 blocks so both v7x TensorCores get work via
    #     the "parallel" grid axis; rounded up to a multiple of 8 and capped
    #     at 1024 rows (per-block footprint stays a few MiB even with
    #     double-buffering -- safe inside v7x's 64 MiB VMEM).
    if block_b is not None:
        TB = block_b
    elif B <= 8:
        TB = B
    else:
        TB = min(1024, ((pl.cdiv(B, 2) + 7) // 8) * 8)
    grid = (pl.cdiv(B, TB),)

    weights = (
        params["w1"], params["b1"],
        params["w2"], params["b2"],
        params["w_heads"], params["b_heads"],
        params["w_out"], params["b_out"],
        params["seg_mask"],
    )

    def w_spec(arr):  # grid-invariant: stays resident in VMEM across blocks
        return pl.BlockSpec(arr.shape, lambda i: (0, 0))

    in_specs = [pl.BlockSpec((TB, S), lambda i: (i, 0))]
    in_specs += [w_spec(w) for w in weights]

    out = pl.pallas_call(
        dueling_kernel,
        out_shape=jax.ShapeDtypeStruct((B, AN), jnp.float32),
        grid=grid,
        in_specs=in_specs,
        # Lane-dense output block (A*N lanes) -> unmasked vector stores.
        out_specs=pl.BlockSpec((TB, AN), lambda i: (i, 0)),
        compiler_params=pltpu.CompilerParams(
            dimension_semantics=("parallel",),
            vmem_limit_bytes=48 * 1024 * 1024,
        ),
    )(x, *weights)

    # (B, A*N) -> (B, A, N) is a free reshape (no transpose, no extra HBM pass).
    return out.reshape(B, A, N)


# ----------------------------------------------------------------------------
# Deterministic NoisyLinear parameter construction (training-mode effective W, b)
# ----------------------------------------------------------------------------
def noisy_linear_effective(key, in_f, out_f, std_init=0.5):
    k1, k2, k3, k4 = jax.random.split(key, 4)
    mu_range = 1.0 / math.sqrt(in_f)
    w_mu = jax.random.uniform(k1, (out_f, in_f), jnp.float32, -mu_range, mu_range)
    b_mu = jax.random.uniform(k2, (out_f,), jnp.float32, -mu_range, mu_range)
    w_sigma = jnp.full((out_f, in_f), std_init / math.sqrt(in_f), jnp.float32)
    b_sigma = jnp.full((out_f,), std_init / math.sqrt(out_f), jnp.float32)

    def scale_noise(k, n):
        z = jax.random.normal(k, (n,), jnp.float32)
        return jnp.sign(z) * jnp.sqrt(jnp.abs(z))

    eps_in = scale_noise(k3, in_f)
    eps_out = scale_noise(k4, out_f)
    w = w_mu + w_sigma * jnp.outer(eps_out, eps_in)
    b = b_mu + b_sigma * eps_out
    return w, b


# ----------------------------------------------------------------------------
# Pure-JAX reference (mirrors the PyTorch forward) for a sanity check.
# ----------------------------------------------------------------------------
def reference_forward(x, layers, action_dim, n_atoms):
    hp = jax.lax.Precision.HIGHEST  # exact f32 matmuls, matching the kernel
    lin = lambda v, wb: jnp.dot(v, wb[0].T, precision=hp) + wb[1]
    h = jax.nn.relu(lin(x, layers["l1"]))
    h = jax.nn.relu(lin(h, layers["l2"]))
    a_hid = jax.nn.relu(lin(h, layers["adv_h"]))
    v_hid = jax.nn.relu(lin(h, layers["val_h"]))
    adv = lin(a_hid, layers["adv_o"]).reshape(-1, action_dim, n_atoms)
    val = lin(v_hid, layers["val_o"]).reshape(-1, 1, n_atoms)
    q = val + adv - adv.mean(axis=1, keepdims=True)
    dist = jax.nn.softmax(q, axis=-1)
    return jnp.maximum(dist, 0.001)


if __name__ == "__main__":
    B, STATE_DIM, HIDDEN_DIM, ACTION_DIM, N_ATOMS = 2, 16, 32, 4, 8
    V_MIN, V_MAX = -10.0, 10.0  # support buffer; only used in get_q_values

    key = jax.random.PRNGKey(0)
    kx, k1, k2, k3, k4, k5, k6 = jax.random.split(key, 7)

    layers = {
        "l1":    noisy_linear_effective(k1, STATE_DIM, HIDDEN_DIM),
        "l2":    noisy_linear_effective(k2, HIDDEN_DIM, HIDDEN_DIM),
        "adv_h": noisy_linear_effective(k3, HIDDEN_DIM, HIDDEN_DIM),
        "adv_o": noisy_linear_effective(k4, HIDDEN_DIM, ACTION_DIM * N_ATOMS),
        "val_h": noisy_linear_effective(k5, HIDDEN_DIM, HIDDEN_DIM),
        "val_o": noisy_linear_effective(k6, HIDDEN_DIM, N_ATOMS),
    }

    x = jax.random.normal(kx, (B, STATE_DIM), jnp.float32)

    # One-time weight layout preparation (hoisted out of the per-step path).
    params = prepare_params(layers, ACTION_DIM, N_ATOMS)
    params = {k: jax.block_until_ready(v) for k, v in params.items()}

    fwd = jax.jit(
        categorical_dueling_forward,
        static_argnames=("action_dim", "n_atoms", "block_b"),
    )
    dist = fwd(x, params, action_dim=ACTION_DIM, n_atoms=N_ATOMS)
    dist = jax.block_until_ready(dist)

    ref = reference_forward(x, layers, ACTION_DIM, N_ATOMS)
    assert dist.shape == (B, ACTION_DIM, N_ATOMS)
    assert jnp.allclose(dist, ref, atol=1e-5, rtol=1e-5), "mismatch vs JAX reference"

    print("KERNEL_OK")
</pallas_src>

<mosaic_0001>
module attributes {stable_mosaic.version = 11 : i64} {
  func.func @dueling_kernel(%arg0: i32, %arg1: memref<2x16xf32, #tpu.memory_space<vmem>>, %arg2: memref<16x32xf32, #tpu.memory_space<vmem>>, %arg3: memref<1x32xf32, #tpu.memory_space<vmem>>, %arg4: memref<32x32xf32, #tpu.memory_space<vmem>>, %arg5: memref<1x32xf32, #tpu.memory_space<vmem>>, %arg6: memref<32x64xf32, #tpu.memory_space<vmem>>, %arg7: memref<1x64xf32, #tpu.memory_space<vmem>>, %arg8: memref<64x32xf32, #tpu.memory_space<vmem>>, %arg9: memref<1x32xf32, #tpu.memory_space<vmem>>, %arg10: memref<32x32xf32, #tpu.memory_space<vmem>>, %arg11: memref<2x32xf32, #tpu.memory_space<vmem>>) attributes {dimension_semantics = [#tpu.dimension_semantics<parallel>], iteration_bounds = array<i64: 1>, scalar_prefetch = 0 : i64, scratch_operands = 0 : i64, tpu.core_type = #tpu.core_type<tc>, window_params = [{transform_indices = @transform_0, window_bounds = array<i64: 2, 16>}, {pipeline_mode = #tpu.pipeline_mode<synchronous>, transform_indices = @transform_1, window_bounds = array<i64: 16, 32>}, {pipeline_mode = #tpu.pipeline_mode<synchronous>, transform_indices = @transform_2, window_bounds = array<i64: 1, 32>}, {pipeline_mode = #tpu.pipeline_mode<synchronous>, transform_indices = @transform_3, window_bounds = array<i64: 32, 32>}, {pipeline_mode = #tpu.pipeline_mode<synchronous>, transform_indices = @transform_4, window_bounds = array<i64: 1, 32>}, {pipeline_mode = #tpu.pipeline_mode<synchronous>, transform_indices = @transform_5, window_bounds = array<i64: 32, 64>}, {pipeline_mode = #tpu.pipeline_mode<synchronous>, transform_indices = @transform_6, window_bounds = array<i64: 1, 64>}, {pipeline_mode = #tpu.pipeline_mode<synchronous>, transform_indices = @transform_7, window_bounds = array<i64: 64, 32>}, {pipeline_mode = #tpu.pipeline_mode<synchronous>, transform_indices = @transform_8, window_bounds = array<i64: 1, 32>}, {pipeline_mode = #tpu.pipeline_mode<synchronous>, transform_indices = @transform_9, window_bounds = array<i64: 32, 32>}, {transform_indices = @transform_10, window_bounds = array<i64: 2, 32>}]} {
    %c0 = arith.constant 0 : index
    %c0_0 = arith.constant 0 : index
    %0 = vector.load %arg1[%c0, %c0_0] : memref<2x16xf32, #tpu.memory_space<vmem>>, vector<2x16xf32>
    %c0_1 = arith.constant 0 : index
    %c0_2 = arith.constant 0 : index
    %1 = vector.load %arg2[%c0_1, %c0_2] : memref<16x32xf32, #tpu.memory_space<vmem>>, vector<16x32xf32>
    %cst = arith.constant dense<0.000000e+00> : vector<2x32xf32>
    %2 = tpu.matmul %0, %1, %cst {dimension_numbers = #tpu.dot_dimension_numbers<[1], [0], [0], [1], [0, 0, 1, 1], [], []>} : vector<2x16xf32>, vector<16x32xf32>, vector<2x32xf32> -> vector<2x32xf32>
    %c0_3 = arith.constant 0 : index
    %c0_4 = arith.constant 0 : index
    %3 = vector.load %arg3[%c0_3, %c0_4] : memref<1x32xf32, #tpu.memory_space<vmem>>, vector<1x32xf32>
    %4 = vector.broadcast %3 : vector<1x32xf32> to vector<2x32xf32>
    %5 = arith.addf %2, %4 : vector<2x32xf32>
    %cst_5 = arith.constant 0.000000e+00 : f32
    %6 = vector.broadcast %cst_5 : f32 to vector<2x32xf32>
    %7 = arith.maximumf %5, %6 : vector<2x32xf32>
    %c0_6 = arith.constant 0 : index
    %c0_7 = arith.constant 0 : index
    %8 = vector.load %arg4[%c0_6, %c0_7] : memref<32x32xf32, #tpu.memory_space<vmem>>, vector<32x32xf32>
    %cst_8 = arith.constant dense<0.000000e+00> : vector<2x32xf32>
    %9 = tpu.matmul %7, %8, %cst_8 {dimension_numbers = #tpu.dot_dimension_numbers<[1], [0], [0], [1], [0, 0, 1, 1], [], []>} : vector<2x32xf32>, vector<32x32xf32>, vector<2x32xf32> -> vector<2x32xf32>
    %c0_9 = arith.constant 0 : index
    %c0_10 = arith.constant 0 : index
    %10 = vector.load %arg5[%c0_9, %c0_10] : memref<1x32xf32, #tpu.memory_space<vmem>>, vector<1x32xf32>
    %11 = vector.broadcast %10 : vector<1x32xf32> to vector<2x32xf32>
    %12 = arith.addf %9, %11 : vector<2x32xf32>
    %cst_11 = arith.constant 0.000000e+00 : f32
    %13 = vector.broadcast %cst_11 : f32 to vector<2x32xf32>
    %14 = arith.maximumf %12, %13 : vector<2x32xf32>
    %c0_12 = arith.constant 0 : index
    %c0_13 = arith.constant 0 : index
    %15 = vector.load %arg6[%c0_12, %c0_13] : memref<32x64xf32, #tpu.memory_space<vmem>>, vector<32x64xf32>
    %cst_14 = arith.constant dense<0.000000e+00> : vector<2x64xf32>
    %16 = tpu.matmul %14, %15, %cst_14 {dimension_numbers = #tpu.dot_dimension_numbers<[1], [0], [0], [1], [0, 0, 1, 1], [], []>} : vector<2x32xf32>, vector<32x64xf32>, vector<2x64xf32> -> vector<2x64xf32>
    %c0_15 = arith.constant 0 : index
    %c0_16 = arith.constant 0 : index
    %17 = vector.load %arg7[%c0_15, %c0_16] : memref<1x64xf32, #tpu.memory_space<vmem>>, vector<1x64xf32>
    %18 = vector.broadcast %17 : vector<1x64xf32> to vector<2x64xf32>
    %19 = arith.addf %16, %18 : vector<2x64xf32>
    %cst_17 = arith.constant 0.000000e+00 : f32
    %20 = vector.broadcast %cst_17 : f32 to vector<2x64xf32>
    %21 = arith.maximumf %19, %20 : vector<2x64xf32>
    %c0_18 = arith.constant 0 : index
    %c0_19 = arith.constant 0 : index
    %22 = vector.load %arg8[%c0_18, %c0_19] : memref<64x32xf32, #tpu.memory_space<vmem>>, vector<64x32xf32>
    %cst_20 = arith.constant dense<0.000000e+00> : vector<2x32xf32>
    %23 = tpu.matmul %21, %22, %cst_20 {dimension_numbers = #tpu.dot_dimension_numbers<[1], [0], [0], [1], [0, 0, 1, 1], [], []>} : vector<2x64xf32>, vector<64x32xf32>, vector<2x32xf32> -> vector<2x32xf32>
    %c0_21 = arith.constant 0 : index
    %c0_22 = arith.constant 0 : index
    %24 = vector.load %arg9[%c0_21, %c0_22] : memref<1x32xf32, #tpu.memory_space<vmem>>, vector<1x32xf32>
    %25 = vector.broadcast %24 : vector<1x32xf32> to vector<2x32xf32>
    %26 = arith.addf %23, %25 : vector<2x32xf32>
    %cst_23 = arith.constant dense<0xFF800000> : vector<2xf32>
    %27 = vector.multi_reduction <maximumf>, %26, %cst_23 [1] : vector<2x32xf32> to vector<2xf32>
    %28 = vector.shape_cast %27 : vector<2xf32> to vector<2x1xf32>
    %29 = vector.broadcast %28 : vector<2x1xf32> to vector<2x32xf32>
    %30 = arith.subf %26, %29 : vector<2x32xf32>
    %31 = math.exp %30 : vector<2x32xf32>
    %c0_24 = arith.constant 0 : index
    %c0_25 = arith.constant 0 : index
    %32 = vector.load %arg10[%c0_24, %c0_25] : memref<32x32xf32, #tpu.memory_space<vmem>>, vector<32x32xf32>
    %cst_26 = arith.constant dense<0.000000e+00> : vector<2x32xf32>
    %33 = tpu.matmul %31, %32, %cst_26 {dimension_numbers = #tpu.dot_dimension_numbers<[1], [0], [0], [1], [0, 0, 1, 1], [], []>} : vector<2x32xf32>, vector<32x32xf32>, vector<2x32xf32> -> vector<2x32xf32>
    %34 = tpu.reciprocal %33 : vector<2x32xf32> -> vector<2x32xf32>
    %35 = arith.mulf %31, %34 : vector<2x32xf32>
    %cst_27 = arith.constant 1.000000e-03 : f32
    %36 = vector.broadcast %cst_27 : f32 to vector<2x32xf32>
    %37 = arith.maximumf %35, %36 : vector<2x32xf32>
    %c0_28 = arith.constant 0 : index
    %c0_29 = arith.constant 0 : index
    %38 = vector.load %arg11[%c0_28, %c0_29] : memref<2x32xf32, #tpu.memory_space<vmem>>, vector<2x32xf32>
    tpu.vector_store %arg11[%c0_28, %c0_29], %37 {strides = array<i32>} : memref<2x32xf32, #tpu.memory_space<vmem>>, vector<2x32xf32>,
    return
  }
  func.func @transform_0(%arg0: i32) -> (i32, i32) {
    %c0_i32 = arith.constant 0 : i32
    %c0_i32_0 = arith.constant 0 : i32
    return %arg0, %c0_i32 : i32, i32
  }
  func.func @transform_1(%arg0: i32) -> (i32, i32) {
    %c0_i32 = arith.constant 0 : i32
    %c0_i32_0 = arith.constant 0 : i32
    %c0_i32_1 = arith.constant 0 : i32
    return %c0_i32, %c0_i32_0 : i32, i32
  }
  func.func @transform_2(%arg0: i32) -> (i32, i32) {
    %c0_i32 = arith.constant 0 : i32
    %c0_i32_0 = arith.constant 0 : i32
    %c0_i32_1 = arith.constant 0 : i32
    return %c0_i32, %c0_i32_0 : i32, i32
  }
  func.func @transform_3(%arg0: i32) -> (i32, i32) {
    %c0_i32 = arith.constant 0 : i32
    %c0_i32_0 = arith.constant 0 : i32
    %c0_i32_1 = arith.constant 0 : i32
    return %c0_i32, %c0_i32_0 : i32, i32
  }
  func.func @transform_4(%arg0: i32) -> (i32, i32) {
    %c0_i32 = arith.constant 0 : i32
    %c0_i32_0 = arith.constant 0 : i32
    %c0_i32_1 = arith.constant 0 : i32
    return %c0_i32, %c0_i32_0 : i32, i32
  }
  func.func @transform_5(%arg0: i32) -> (i32, i32) {
    %c0_i32 = arith.constant 0 : i32
    %c0_i32_0 = arith.constant 0 : i32
    %c0_i32_1 = arith.constant 0 : i32
    return %c0_i32, %c0_i32_0 : i32, i32
  }
  func.func @transform_6(%arg0: i32) -> (i32, i32) {
    %c0_i32 = arith.constant 0 : i32
    %c0_i32_0 = arith.constant 0 : i32
    %c0_i32_1 = arith.constant 0 : i32
    return %c0_i32, %c0_i32_0 : i32, i32
  }
  func.func @transform_7(%arg0: i32) -> (i32, i32) {
    %c0_i32 = arith.constant 0 : i32
    %c0_i32_0 = arith.constant 0 : i32
    %c0_i32_1 = arith.constant 0 : i32
    return %c0_i32, %c0_i32_0 : i32, i32
  }
  func.func @transform_8(%arg0: i32) -> (i32, i32) {
    %c0_i32 = arith.constant 0 : i32
    %c0_i32_0 = arith.constant 0 : i32
    %c0_i32_1 = arith.constant 0 : i32
    return %c0_i32, %c0_i32_0 : i32, i32
  }
  func.func @transform_9(%arg0: i32) -> (i32, i32) {
    %c0_i32 = arith.constant 0 : i32
    %c0_i32_0 = arith.constant 0 : i32
    %c0_i32_1 = arith.constant 0 : i32
    return %c0_i32, %c0_i32_0 : i32, i32
  }
  func.func @transform_10(%arg0: i32) -> (i32, i32) {
    %c0_i32 = arith.constant 0 : i32
    %c0_i32_0 = arith.constant 0 : i32
    return %arg0, %c0_i32 : i32, i32
  }
}

</mosaic_0001>

<llo_original>
// kernel: categorical_dueling_forward.1
$region0: #{categorical_dueling_forward.1}
  #allocation0 [shape = 'u32[]', space=smem, size = 0x4, offset = 0x4, fixed_abs, tag = 'smem constant byte address 0x4 - core index']
  #allocation1 [shape = 'u32[144,128]{1,0:T(1,128)}', space=vmem, size = 0x12000, scoped, tag = 'internal scratch']
  %s0 = inlined_call_operand.hbm [shape: f32[2,16], index: 0, kind: input, shape index: {}]
  %s1 = inlined_call_operand.hbm [shape: f32[16,32], index: 1, kind: input, shape index: {}]
  %s2 = inlined_call_operand.vmem [shape: f32[1,32], index: 2, kind: input, shape index: {}]
  %s3 = inlined_call_operand.vmem [shape: f32[32,32], index: 3, kind: input, shape index: {}]
  %s4 = inlined_call_operand.vmem [shape: f32[1,32], index: 4, kind: input, shape index: {}]
  %s5 = inlined_call_operand.vmem [shape: f32[32,64], index: 5, kind: input, shape index: {}]
  %s6 = inlined_call_operand.hbm [shape: f32[1,64], index: 6, kind: input, shape index: {}]
  %s7 = inlined_call_operand.vmem [shape: f32[64,32], index: 7, kind: input, shape index: {}]
  %s8 = inlined_call_operand.hbm [shape: f32[1,32], index: 8, kind: input, shape index: {}]
  %s9 = inlined_call_operand.vmem [shape: f32[32,32], index: 9, kind: input, shape index: {}]
  %s10 = inlined_call_operand.vmem [shape: f32[2,32], index: 10, kind: output, shape index: {}]
  %s11 = sld [smem:[#allocation0]]
  $region66: #{categorical_dueling_forward.1} parent=0
    _
  %s13 = ssub.s32 1, %s11
  %s14 = scalar_select 0, %s13, %s11
  $region1: #{categorical_dueling_forward.1} parent=0
    #allocation2 [shape = 'u8[1024]{0}', space=vmem, size = 0x400, scoped, tag = 'input window, operand 0, single buffered']
    #allocation3 [shape = 's32[1]{0}', space=sflag, size = 0x4, scoped, tag = 'scoped memory for categorical_dueling_forward.1']
    #allocation4 [shape = 'u8[8192]{0}', space=vmem, size = 0x2000, scoped, tag = 'input window, operand 1, single buffered']
    #allocation5 [shape = 's32[1]{0}', space=sflag, size = 0x4, scoped, tag = 'scoped memory for categorical_dueling_forward.1']
    #allocation6 [shape = 'u8[512]{0}', space=vmem, size = 0x400, scoped, tag = 'input window, operand 6, single buffered']
    #allocation7 [shape = 'u8[512]{0}', space=vmem, size = 0x400, scoped, tag = 'input window, operand 8, single buffered']
    #allocation8 [shape = 's32[1]{0}', space=sflag, size = 0x4, scoped, tag = 'scoped memory for categorical_dueling_forward.1']
    %15 = vsyncpa [#allocation3], 0
    %16 = vsyncpa [#allocation5], 0
    %17 = vsyncpa [#allocation8], 0
    // Predicated region
    $region2: #{categorical_dueling_forward.1} parent=1 // pred_check
      _
    $region3: #{categorical_dueling_forward.1} parent=1 // pred_check_branch
      %19 = sbr.rel (0) target = $region5
    $region4: #{categorical_dueling_forward.1} parent=1 // pred_region
      %s21 = ssub.s32 32, 32
      %22 = vsyncadd [#allocation3], %s21
      %s24 = sshll.u32 [#allocation2], 4
      %s25 = int_to_ptr.vmem [resolvable:$true] %s24
      %27 = dma.hbm_to_vmem [thread:$0]  %s0, 32, %s25, [#allocation3]
    $region5: #{categorical_dueling_forward.1} parent=1 // pred_fallthru
      _
    // Predicated region
    $region6: #{categorical_dueling_forward.1} parent=1 // pred_check
      _
    $region7: #{categorical_dueling_forward.1} parent=1 // pred_check_branch
      %29 = sbr.rel (0) target = $region9
    $region8: #{categorical_dueling_forward.1} parent=1 // pred_region
      %s31 = ssub.s32 256, 256
      %32 = vsyncadd [#allocation5], %s31
      %s33 = sshll.u32 [#allocation4], 4
      %s34 = int_to_ptr.vmem [resolvable:$true] %s33
      %39 = dma.hbm_to_vmem [thread:$0]  %s1, 256, %s34, [#allocation5], 128, 128, 8
    $region9: #{categorical_dueling_forward.1} parent=1 // pred_fallthru
      _
    // Predicated region
    $region10: #{categorical_dueling_forward.1} parent=1 // pred_check
      _
    $region11: #{categorical_dueling_forward.1} parent=1 // pred_check_branch
      %41 = sbr.rel (0) target = $region13
    $region12: #{categorical_dueling_forward.1} parent=1 // pred_region
      _
    $region13: #{categorical_dueling_forward.1} parent=1 // pred_fallthru
      _
    // Predicated region
    $region14: #{categorical_dueling_forward.1} parent=1 // pred_check
      _
    $region15: #{categorical_dueling_forward.1} parent=1 // pred_check_branch
      %43 = sbr.rel (0) target = $region17
    $region16: #{categorical_dueling_forward.1} parent=1 // pred_region
      _
    $region17: #{categorical_dueling_forward.1} parent=1 // pred_fallthru
      _
    // Predicated region
    $region18: #{categorical_dueling_forward.1} parent=1 // pred_check
      _
    $region19: #{categorical_dueling_forward.1} parent=1 // pred_check_branch
      %45 = sbr.rel (0) target = $region21
    $region20: #{categorical_dueling_forward.1} parent=1 // pred_region
      _
    $region21: #{categorical_dueling_forward.1} parent=1 // pred_fallthru
      _
    // Predicated region
    $region22: #{categorical_dueling_forward.1} parent=1 // pred_check
      _
    $region23: #{categorical_dueling_forward.1} parent=1 // pred_check_branch
      %47 = sbr.rel (0) target = $region25
    $region24: #{categorical_dueling_forward.1} parent=1 // pred_region
      _
    $region25: #{categorical_dueling_forward.1} parent=1 // pred_fallthru
      _
    // Predicated region
    $region26: #{categorical_dueling_forward.1} parent=1 // pred_check
      _
    $region27: #{categorical_dueling_forward.1} parent=1 // pred_check_branch
      %49 = sbr.rel (0) target = $region29
    $region28: #{categorical_dueling_forward.1} parent=1 // pred_region
      %s51 = ssub.s32 16, 16
      %52 = vsyncadd [#allocation5], %s51
      %s54 = sshll.u32 [#allocation6], 4
      %s55 = int_to_ptr.vmem [resolvable:$true] %s54
      %57 = dma.hbm_to_vmem [thread:$0]  %s6, 16, %s55, [#allocation5]
    $region29: #{categorical_dueling_forward.1} parent=1 // pred_fallthru
      _
    // Predicated region
    $region30: #{categorical_dueling_forward.1} parent=1 // pred_check
      _
    $region31: #{categorical_dueling_forward.1} parent=1 // pred_check_branch
      %59 = sbr.rel (0) target = $region33
    $region32: #{categorical_dueling_forward.1} parent=1 // pred_region
      _
    $region33: #{categorical_dueling_forward.1} parent=1 // pred_fallthru
      _
    // Predicated region
    $region34: #{categorical_dueling_forward.1} parent=1 // pred_check
      _
    $region35: #{categorical_dueling_forward.1} parent=1 // pred_check_branch
      %61 = sbr.rel (0) target = $region37
    $region36: #{categorical_dueling_forward.1} parent=1 // pred_region
      %s63 = ssub.s32 16, 16
      %64 = vsyncadd [#allocation8], %s63
      %s66 = sshll.u32 [#allocation7], 4
      %s67 = int_to_ptr.vmem [resolvable:$true] %s66
      %69 = dma.hbm_to_vmem [thread:$0]  %s8, 16, %s67, [#allocation8]
    $region37: #{categorical_dueling_forward.1} parent=1 // pred_fallthru
      _
    // Predicated region
    $region38: #{categorical_dueling_forward.1} parent=1 // pred_check
      _
    $region39: #{categorical_dueling_forward.1} parent=1 // pred_check_branch
      %71 = sbr.rel (0) target = $region41
    $region40: #{categorical_dueling_forward.1} parent=1 // pred_region
      _
    $region41: #{categorical_dueling_forward.1} parent=1 // pred_fallthru
      _
    // Predicated region
    $region42: #{categorical_dueling_forward.1} parent=1 // pred_check
      _
    $region43: #{categorical_dueling_forward.1} parent=1 // pred_check_branch
      %73 = sbr.rel (0) target = $region45
    $region44: #{categorical_dueling_forward.1} parent=1 // pred_region
      %74 = dma.done [#allocation3], 32
    $region45: #{categorical_dueling_forward.1} parent=1 // pred_fallthru
      _
    // Predicated region
    $region46: #{categorical_dueling_forward.1} parent=1 // pred_check
      _
    $region47: #{categorical_dueling_forward.1} parent=1 // pred_check_branch
      %76 = sbr.rel (0) target = $region49
    $region48: #{categorical_dueling_forward.1} parent=1 // pred_region
      %77 = dma.done [#allocation5], 256
    $region49: #{categorical_dueling_forward.1} parent=1 // pred_fallthru
      _
    // Predicated region
    $region50: #{categorical_dueling_forward.1} parent=1 // pred_check
      _
    $region51: #{categorical_dueling_forward.1} parent=1 // pred_check_branch
      %79 = sbr.rel (0) target = $region53
    $region52: #{categorical_dueling_forward.1} parent=1 // pred_region
      %80 = dma.done [#allocation5], 16
    $region53: #{categorical_dueling_forward.1} parent=1 // pred_fallthru
      _
    // Predicated region
    $region54: #{categorical_dueling_forward.1} parent=1 // pred_check
      _
    $region55: #{categorical_dueling_forward.1} parent=1 // pred_check_branch
      %82 = sbr.rel (0) target = $region57
    $region56: #{categorical_dueling_forward.1} parent=1 // pred_region
      %83 = dma.done [#allocation8], 16
    $region57: #{categorical_dueling_forward.1} parent=1 // pred_fallthru
      _
    %v84 = vld [vmem:[#allocation2] sm:$0x3]
    %v85 = vld [vmem:[#allocation4] sm:$0xff]
    %v86 = vld [vmem:[#allocation4 + $0x8] sm:$0xff]
    %v87 = vld [vmem:[%s2] sm:$0x1]
    %v89 = vlaneseq
    %v90 = vshrl.u32 %v89, 7
    %v91 = vsub.s32 0, %v90
    %v92 = vrot.slane %v87, %v91
    %vm94 = vcmask 130048
    %v96 = vsel %vm94, %v84, 0
    %98 = vmatprep.subr.mxu0 0.0
    %99 = vmatpush1.msra.mxu0 %v85
    %100 = vmatprep.subr.mxu0 0.0
    %101 = vmatpush1.msra.mxu0 %v86
    %102 = vmatprep.subr.mxu0 0.0
    %103 = vmatpush1.msra.mxu0 0.0
    %104 = vmatprep.subr.mxu0 0.0
    %105 = vmatpush1.msra.mxu0 0.0
    %106 = vmatprep.subr.mxu0 0.0
    %107 = vmatpush1.msra.mxu0 0.0
    %108 = vmatprep.subr.mxu0 0.0
    %109 = vmatpush1.msra.mxu0 0.0
    %110 = vmatprep.subr.mxu0 0.0
    %111 = vmatpush1.msra.mxu0 0.0
    %112 = vmatprep.subr.mxu0 0.0
    %113 = vmatpush1.msra.mxu0 0.0
    %114 = vmatprep.subr.mxu0 0.0
    %115 = vmatpush1.msra.mxu0 0.0
    %116 = vmatprep.subr.mxu0 0.0
    %117 = vmatpush1.msra.mxu0 0.0
    %118 = vmatprep.subr.mxu0 0.0
    %119 = vmatpush1.msra.mxu0 0.0
    %120 = vmatprep.subr.mxu0 0.0
    %121 = vmatpush1.msra.mxu0 0.0
    %122 = vmatprep.subr.mxu0 0.0
    %123 = vmatpush1.msra.mxu0 0.0
    %124 = vmatprep.subr.mxu0 0.0
    %125 = vmatpush1.msra.mxu0 0.0
    %126 = vmatprep.subr.mxu0 0.0
    %127 = vmatpush1.msra.mxu0 0.0
    %128 = vmatprep.subr.mxu0 0.0
    %129 = vmatpush1.msra.mxu0 0.0
    %130 = vmatprep.subr.mxu0 0.0
    %131 = vmatpush1.msra.mxu0 0.0
    %132 = vmatprep.subr.mxu0 0.0
    %133 = vmatpush1.msra.mxu0 0.0
    %134 = vmatprep.subr.mxu0 0.0
    %135 = vmatpush1.msra.mxu0 0.0
    %136 = vmatprep.subr.mxu0 0.0
    %137 = vmatpush1.msra.mxu0 0.0
    %138 = vmatprep.subr.mxu0 0.0
    %139 = vmatpush1.msra.mxu0 0.0
    %140 = vmatprep.subr.mxu0 0.0
    %141 = vmatpush1.msra.mxu0 0.0
    %142 = vmatprep.subr.mxu0 0.0
    %143 = vmatpush1.msra.mxu0 0.0
    %144 = vmatprep.subr.mxu0 0.0
    %145 = vmatpush1.msra.mxu0 0.0
    %146 = vmatprep.subr.mxu0 0.0
    %147 = vmatpush1.msra.mxu0 0.0
    %148 = vmatprep.subr.mxu0 0.0
    %149 = vmatpush1.msra.mxu0 0.0
    %150 = vmatprep.subr.mxu0 0.0
    %151 = vmatpush1.msra.mxu0 0.0
    %152 = vmatprep.subr.mxu0 0.0
    %153 = vmatpush1.msra.mxu0 0.0
    %154 = vmatprep.subr.mxu0 0.0
    %155 = vmatpush1.msra.mxu0 0.0
    %156 = vmatprep.subr.mxu0 0.0
    %157 = vmatpush1.msra.mxu0 0.0
    %158 = vmatprep.subr.mxu0 0.0
    %159 = vmatpush1.msra.mxu0 0.0
    %160 = vmatprep.subr.mxu0 0.0
    %161 = vmatpush1.msra.mxu0 0.0
    %162 = vmatprep.mubr.f32.mxu0 0.0
    %163 = vmatmul.mubr.f32.gmra.mrb[0].mxu0 %v96
    %v164 = vpop.f32.mrb[0].mxu0
    %v165 = vadd.f32 %v92, %v164
    %v166 = vpop.f32.mrb[0].mxu0
    %167 = vdwg.mxu0
    %v168 = vmax.f32 %v165, 0.0
    %v169 = vld [vmem:[%s3] sm:$0xff]
    %v170 = vld [vmem:[%s3 + $0x8] sm:$0xff]
    %v171 = vld [vmem:[%s3 + $0x10] sm:$0xff]
    %v172 = vld [vmem:[%s3 + $0x18] sm:$0xff]
    %v173 = vld [vmem:[%s4] sm:$0x1]
    %v175 = vlaneseq
    %v176 = vshrl.u32 %v175, 7
    %v177 = vsub.s32 0, %v176
    %v178 = vrot.slane %v173, %v177
    %vm180 = vcmask 261120
    %v182 = vsel %vm180, %v168, 0
    %184 = vmatprep.subr.mxu0 0.0
    %185 = vmatpush1.msra.mxu0 %v169
    %186 = vmatprep.subr.mxu0 0.0
    %187 = vmatpush1.msra.mxu0 %v170
    %188 = vmatprep.subr.mxu0 0.0
    %189 = vmatpush1.msra.mxu0 %v171
    %190 = vmatprep.subr.mxu0 0.0
    %191 = vmatpush1.msra.mxu0 %v172
    %192 = vmatprep.subr.mxu0 0.0
    %193 = vmatpush1.msra.mxu0 0.0
    %194 = vmatprep.subr.mxu0 0.0
    %195 = vmatpush1.msra.mxu0 0.0
    %196 = vmatprep.subr.mxu0 0.0
    %197 = vmatpush1.msra.mxu0 0.0
    %198 = vmatprep.subr.mxu0 0.0
    %199 = vmatpush1.msra.mxu0 0.0
    %200 = vmatprep.subr.mxu0 0.0
    %201 = vmatpush1.msra.mxu0 0.0
    %202 = vmatprep.subr.mxu0 0.0
    %203 = vmatpush1.msra.mxu0 0.0
    %204 = vmatprep.subr.mxu0 0.0
    %205 = vmatpush1.msra.mxu0 0.0
    %206 = vmatprep.subr.mxu0 0.0
    %207 = vmatpush1.msra.mxu0 0.0
    %208 = vmatprep.subr.mxu0 0.0
    %209 = vmatpush1.msra.mxu0 0.0
    %210 = vmatprep.subr.mxu0 0.0
    %211 = vmatpush1.msra.mxu0 0.0
    %212 = vmatprep.subr.mxu0 0.0
    %213 = vmatpush1.msra.mxu0 0.0
    %214 = vmatprep.subr.mxu0 0.0
    %215 = vmatpush1.msra.mxu0 0.0
    %216 = vmatprep.subr.mxu0 0.0
    %217 = vmatpush1.msra.mxu0 0.0
    %218 = vmatprep.subr.mxu0 0.0
    %219 = vmatpush1.msra.mxu0 0.0
    %220 = vmatprep.subr.mxu0 0.0
    %221 = vmatpush1.msra.mxu0 0.0
    %222 = vmatprep.subr.mxu0 0.0
    %223 = vmatpush1.msra.mxu0 0.0
    %224 = vmatprep.subr.mxu0 0.0
    %225 = vmatpush1.msra.mxu0 0.0
    %226 = vmatprep.subr.mxu0 0.0
    %227 = vmatpush1.msra.mxu0 0.0
    %228 = vmatprep.subr.mxu0 0.0
    %229 = vmatpush1.msra.mxu0 0.0
    %230 = vmatprep.subr.mxu0 0.0
    %231 = vmatpush1.msra.mxu0 0.0
    %232 = vmatprep.subr.mxu0 0.0
    %233 = vmatpush1.msra.mxu0 0.0
    %234 = vmatprep.subr.mxu0 0.0
    %235 = vmatpush1.msra.mxu0 0.0
    %236 = vmatprep.subr.mxu0 0.0
    %237 = vmatpush1.msra.mxu0 0.0
    %238 = vmatprep.subr.mxu0 0.0
    %239 = vmatpush1.msra.mxu0 0.0
    %240 = vmatprep.subr.mxu0 0.0
    %241 = vmatpush1.msra.mxu0 0.0
    %242 = vmatprep.subr.mxu0 0.0
    %243 = vmatpush1.msra.mxu0 0.0
    %244 = vmatprep.subr.mxu0 0.0
    %245 = vmatpush1.msra.mxu0 0.0
    %246 = vmatprep.subr.mxu0 0.0
    %247 = vmatpush1.msra.mxu0 0.0
    %248 = vmatprep.mubr.f32.mxu0 0.0
    %249 = vmatmul.mubr.f32.gmra.mrb[0].mxu0 %v182
    %v250 = vpop.f32.mrb[0].mxu0
    %v251 = vadd.f32 %v178, %v250
    %v252 = vpop.f32.mrb[0].mxu0
    %253 = vdwg.mxu0
    %v254 = vmax.f32 %v251, 0.0
    %v255 = vld [vmem:[%s5] sm:$0xff]
    %v256 = vld [vmem:[%s5 + $0x8] sm:$0xff]
    %v257 = vld [vmem:[%s5 + $0x10] sm:$0xff]
    %v258 = vld [vmem:[%s5 + $0x18] sm:$0xff]
    %v259 = vld [vmem:[#allocation6] sm:$0x1]
    %v261 = vlaneseq
    %v262 = vshrl.u32 %v261, 7
    %v263 = vsub.s32 0, %v262
    %v264 = vrot.slane %v259, %v263
    %v267 = vsel %vm180, %v254, 0
    %269 = vmatprep.subr.mxu0 0.0
    %270 = vmatpush1.msra.mxu0 %v255
    %271 = vmatprep.subr.mxu0 0.0
    %272 = vmatpush1.msra.mxu0 %v256
    %273 = vmatprep.subr.mxu0 0.0
    %274 = vmatpush1.msra.mxu0 %v257
    %275 = vmatprep.subr.mxu0 0.0
    %276 = vmatpush1.msra.mxu0 %v258
    %277 = vmatprep.subr.mxu0 0.0
    %278 = vmatpush1.msra.mxu0 0.0
    %279 = vmatprep.subr.mxu0 0.0
    %280 = vmatpush1.msra.mxu0 0.0
    %281 = vmatprep.subr.mxu0 0.0
    %282 = vmatpush1.msra.mxu0 0.0
    %283 = vmatprep.subr.mxu0 0.0
    %284 = vmatpush1.msra.mxu0 0.0
    %285 = vmatprep.subr.mxu0 0.0
    %286 = vmatpush1.msra.mxu0 0.0
    %287 = vmatprep.subr.mxu0 0.0
    %288 = vmatpush1.msra.mxu0 0.0
    %289 = vmatprep.subr.mxu0 0.0
    %290 = vmatpush1.msra.mxu0 0.0
    %291 = vmatprep.subr.mxu0 0.0
    %292 = vmatpush1.msra.mxu0 0.0
    %293 = vmatprep.subr.mxu0 0.0
    %294 = vmatpush1.msra.mxu0 0.0
    %295 = vmatprep.subr.mxu0 0.0
    %296 = vmatpush1.msra.mxu0 0.0
    %297 = vmatprep.subr.mxu0 0.0
    %298 = vmatpush1.msra.mxu0 0.0
    %299 = vmatprep.subr.mxu0 0.0
    %300 = vmatpush1.msra.mxu0 0.0
    %301 = vmatprep.subr.mxu0 0.0
    %302 = vmatpush1.msra.mxu0 0.0
    %303 = vmatprep.subr.mxu0 0.0
    %304 = vmatpush1.msra.mxu0 0.0
    %305 = vmatprep.subr.mxu0 0.0
    %306 = vmatpush1.msra.mxu0 0.0
    %307 = vmatprep.subr.mxu0 0.0
    %308 = vmatpush1.msra.mxu0 0.0
    %309 = vmatprep.subr.mxu0 0.0
    %310 = vmatpush1.msra.mxu0 0.0
    %311 = vmatprep.subr.mxu0 0.0
    %312 = vmatpush1.msra.mxu0 0.0
    %313 = vmatprep.subr.mxu0 0.0
    %314 = vmatpush1.msra.mxu0 0.0
    %315 = vmatprep.subr.mxu0 0.0
    %316 = vmatpush1.msra.mxu0 0.0
    %317 = vmatprep.subr.mxu0 0.0
    %318 = vmatpush1.msra.mxu0 0.0
    %319 = vmatprep.subr.mxu0 0.0
    %320 = vmatpush1.msra.mxu0 0.0
    %321 = vmatprep.subr.mxu0 0.0
    %322 = vmatpush1.msra.mxu0 0.0
    %323 = vmatprep.subr.mxu0 0.0
    %324 = vmatpush1.msra.mxu0 0.0
    %325 = vmatprep.subr.mxu0 0.0
    %326 = vmatpush1.msra.mxu0 0.0
    %327 = vmatprep.subr.mxu0 0.0
    %328 = vmatpush1.msra.mxu0 0.0
    %329 = vmatprep.subr.mxu0 0.0
    %330 = vmatpush1.msra.mxu0 0.0
    %331 = vmatprep.subr.mxu0 0.0
    %332 = vmatpush1.msra.mxu0 0.0
    %333 = vmatprep.mubr.f32.mxu0 0.0
    %334 = vmatmul.mubr.f32.gmra.mrb[0].mxu0 %v267
    %v335 = vpop.f32.mrb[0].mxu0
    %v336 = vadd.f32 %v264, %v335
    %v337 = vpop.f32.mrb[0].mxu0
    %338 = vdwg.mxu0
    %v339 = vmax.f32 %v336, 0.0
    %v340 = vld [vmem:[%s7] sm:$0xff]
    %v341 = vld [vmem:[%s7 + $0x8] sm:$0xff]
    %v342 = vld [vmem:[%s7 + $0x10] sm:$0xff]
    %v343 = vld [vmem:[%s7 + $0x18] sm:$0xff]
    %v344 = vld [vmem:[%s7 + $0x20] sm:$0xff]
    %v345 = vld [vmem:[%s7 + $0x28] sm:$0xff]
    %v346 = vld [vmem:[%s7 + $0x30] sm:$0xff]
    %v347 = vld [vmem:[%s7 + $0x38] sm:$0xff]
    %v348 = vld [vmem:[#allocation7] sm:$0x1]
    %v350 = vlaneseq
    %v351 = vshrl.u32 %v350, 7
    %v352 = vsub.s32 0, %v351
    %v353 = vrot.slane %v348, %v352
    %vm355 = vcmask 523264
    %v357 = vsel %vm355, %v339, 0
    %359 = vmatprep.subr.mxu0 0.0
    %360 = vmatpush1.msra.mxu0 %v340
    %361 = vmatprep.subr.mxu0 0.0
    %362 = vmatpush1.msra.mxu0 %v341
    %363 = vmatprep.subr.mxu0 0.0
    %364 = vmatpush1.msra.mxu0 %v342
    %365 = vmatprep.subr.mxu0 0.0
    %366 = vmatpush1.msra.mxu0 %v343
    %367 = vmatprep.subr.mxu0 0.0
    %368 = vmatpush1.msra.mxu0 %v344
    %369 = vmatprep.subr.mxu0 0.0
    %370 = vmatpush1.msra.mxu0 %v345
    %371 = vmatprep.subr.mxu0 0.0
    %372 = vmatpush1.msra.mxu0 %v346
    %373 = vmatprep.subr.mxu0 0.0
    %374 = vmatpush1.msra.mxu0 %v347
    %375 = vmatprep.subr.mxu0 0.0
    %376 = vmatpush1.msra.mxu0 0.0
    %377 = vmatprep.subr.mxu0 0.0
    %378 = vmatpush1.msra.mxu0 0.0
    %379 = vmatprep.subr.mxu0 0.0
    %380 = vmatpush1.msra.mxu0 0.0
    %381 = vmatprep.subr.mxu0 0.0
    %382 = vmatpush1.msra.mxu0 0.0
    %383 = vmatprep.subr.mxu0 0.0
    %384 = vmatpush1.msra.mxu0 0.0
    %385 = vmatprep.subr.mxu0 0.0
    %386 = vmatpush1.msra.mxu0 0.0
    %387 = vmatprep.subr.mxu0 0.0
    %388 = vmatpush1.msra.mxu0 0.0
    %389 = vmatprep.subr.mxu0 0.0
    %390 = vmatpush1.msra.mxu0 0.0
    %391 = vmatprep.subr.mxu0 0.0
    %392 = vmatpush1.msra.mxu0 0.0
    %393 = vmatprep.subr.mxu0 0.0
    %394 = vmatpush1.msra.mxu0 0.0
    %395 = vmatprep.subr.mxu0 0.0
    %396 = vmatpush1.msra.mxu0 0.0
    %397 = vmatprep.subr.mxu0 0.0
    %398 = vmatpush1.msra.mxu0 0.0
    %399 = vmatprep.subr.mxu0 0.0
    %400 = vmatpush1.msra.mxu0 0.0
    %401 = vmatprep.subr.mxu0 0.0
    %402 = vmatpush1.msra.mxu0 0.0
    %403 = vmatprep.subr.mxu0 0.0
    %404 = vmatpush1.msra.mxu0 0.0
    %405 = vmatprep.subr.mxu0 0.0
    %406 = vmatpush1.msra.mxu0 0.0
    %407 = vmatprep.subr.mxu0 0.0
    %408 = vmatpush1.msra.mxu0 0.0
    %409 = vmatprep.subr.mxu0 0.0
    %410 = vmatpush1.msra.mxu0 0.0
    %411 = vmatprep.subr.mxu0 0.0
    %412 = vmatpush1.msra.mxu0 0.0
    %413 = vmatprep.subr.mxu0 0.0
    %414 = vmatpush1.msra.mxu0 0.0
    %415 = vmatprep.subr.mxu0 0.0
    %416 = vmatpush1.msra.mxu0 0.0
    %417 = vmatprep.subr.mxu0 0.0
    %418 = vmatpush1.msra.mxu0 0.0
    %419 = vmatprep.subr.mxu0 0.0
    %420 = vmatpush1.msra.mxu0 0.0
    %421 = vmatprep.subr.mxu0 0.0
    %422 = vmatpush1.msra.mxu0 0.0
    %423 = vmatprep.mubr.f32.mxu0 0.0
    %424 = vmatmul.mubr.f32.gmra.mrb[0].mxu0 %v357
    %v425 = vpop.f32.mrb[0].mxu0
    %v426 = vadd.f32 %v353, %v425
    %v427 = vpop.f32.mrb[0].mxu0
    %428 = vdwg.mxu0
    %vm429 = vcmask 254976
    %v430 = vsel %vm429, %v426, -inf
    %431 = vmax.xlane.f32.xlu0 %v430
    %v432 = vpop.xlane.xlu0 %431
    %v433 = vsub.f32 %v426, %v432
    %v434 = vmul.f32 %v433, 1.442695
    %v435 = vpow.pop %v434
    %v436 = vld [vmem:[%s9] sm:$0xff]
    %v437 = vld [vmem:[%s9 + $0x8] sm:$0xff]
    %v438 = vld [vmem:[%s9 + $0x10] sm:$0xff]
    %v439 = vld [vmem:[%s9 + $0x18] sm:$0xff]
    %v441 = vsel %vm180, %v435, 0
    %443 = vmatprep.subr.mxu0 0.0
    %444 = vmatpush1.msra.mxu0 %v436
    %445 = vmatprep.subr.mxu0 0.0
    %446 = vmatpush1.msra.mxu0 %v437
    %447 = vmatprep.subr.mxu0 0.0
    %448 = vmatpush1.msra.mxu0 %v438
    %449 = vmatprep.subr.mxu0 0.0
    %450 = vmatpush1.msra.mxu0 %v439
    %451 = vmatprep.subr.mxu0 0.0
    %452 = vmatpush1.msra.mxu0 0.0
    %453 = vmatprep.subr.mxu0 0.0
    %454 = vmatpush1.msra.mxu0 0.0
    %455 = vmatprep.subr.mxu0 0.0
    %456 = vmatpush1.msra.mxu0 0.0
    %457 = vmatprep.subr.mxu0 0.0
    %458 = vmatpush1.msra.mxu0 0.0
    %459 = vmatprep.subr.mxu0 0.0
    %460 = vmatpush1.msra.mxu0 0.0
    %461 = vmatprep.subr.mxu0 0.0
    %462 = vmatpush1.msra.mxu0 0.0
    %463 = vmatprep.subr.mxu0 0.0
    %464 = vmatpush1.msra.mxu0 0.0
    %465 = vmatprep.subr.mxu0 0.0
    %466 = vmatpush1.msra.mxu0 0.0
    %467 = vmatprep.subr.mxu0 0.0
    %468 = vmatpush1.msra.mxu0 0.0
    %469 = vmatprep.subr.mxu0 0.0
    %470 = vmatpush1.msra.mxu0 0.0
    %471 = vmatprep.subr.mxu0 0.0
    %472 = vmatpush1.msra.mxu0 0.0
    %473 = vmatprep.subr.mxu0 0.0
    %474 = vmatpush1.msra.mxu0 0.0
    %475 = vmatprep.subr.mxu0 0.0
    %476 = vmatpush1.msra.mxu0 0.0
    %477 = vmatprep.subr.mxu0 0.0
    %478 = vmatpush1.msra.mxu0 0.0
    %479 = vmatprep.subr.mxu0 0.0
    %480 = vmatpush1.msra.mxu0 0.0
    %481 = vmatprep.subr.mxu0 0.0
    %482 = vmatpush1.msra.mxu0 0.0
    %483 = vmatprep.subr.mxu0 0.0
    %484 = vmatpush1.msra.mxu0 0.0
    %485 = vmatprep.subr.mxu0 0.0
    %486 = vmatpush1.msra.mxu0 0.0
    %487 = vmatprep.subr.mxu0 0.0
    %488 = vmatpush1.msra.mxu0 0.0
    %489 = vmatprep.subr.mxu0 0.0
    %490 = vmatpush1.msra.mxu0 0.0
    %491 = vmatprep.subr.mxu0 0.0
    %492 = vmatpush1.msra.mxu0 0.0
    %493 = vmatprep.subr.mxu0 0.0
    %494 = vmatpush1.msra.mxu0 0.0
    %495 = vmatprep.subr.mxu0 0.0
    %496 = vmatpush1.msra.mxu0 0.0
    %497 = vmatprep.subr.mxu0 0.0
    %498 = vmatpush1.msra.mxu0 0.0
    %499 = vmatprep.subr.mxu0 0.0
    %500 = vmatpush1.msra.mxu0 0.0
    %501 = vmatprep.subr.mxu0 0.0
    %502 = vmatpush1.msra.mxu0 0.0
    %503 = vmatprep.subr.mxu0 0.0
    %504 = vmatpush1.msra.mxu0 0.0
    %505 = vmatprep.subr.mxu0 0.0
    %506 = vmatpush1.msra.mxu0 0.0
    %507 = vmatprep.mubr.f32.mxu0 0.0
    %508 = vmatmul.mubr.f32.gmra.mrb[0].mxu0 %v441
    %v509 = vpop.f32.mrb[0].mxu0
    %v510 = vadd.f32 0.0, %v509
    %v511 = vpop.f32.mrb[0].mxu0
    %512 = vdwg.mxu0
    %v513 = vrcp.pop %v510
    %v514 = vmul.f32 %v435, %v513
    %v515 = vmax.f32 %v514, 0.001
    %516 = vst.msk [vmem:[%s10] sm:$0x3] %vm429, %v515
    // Predicated region
    $region58: #{categorical_dueling_forward.1} parent=1 // pred_check
      _
    $region59: #{categorical_dueling_forward.1} parent=1 // pred_check_branch
      %518 = sbr.rel (0) target = $region61
    $region60: #{categorical_dueling_forward.1} parent=1 // pred_region
      _
    $region61: #{categorical_dueling_forward.1} parent=1 // pred_fallthru
      _
    // Predicated region
    $region62: #{categorical_dueling_forward.1} parent=1 // pred_check
      _
    $region63: #{categorical_dueling_forward.1} parent=1 // pred_check_branch
      %520 = sbr.rel (0) target = $region65
    $region64: #{categorical_dueling_forward.1} parent=1 // pred_region
      _
    $region65: #{categorical_dueling_forward.1} parent=1 // pred_fallthru
      _
    %521 = vsyncpa [#allocation3], 1
    %522 = vsyncpa [#allocation5], 1
    %523 = vsyncpa [#allocation8], 1

</llo_original>
